<compile_context>
chip_gen: v5e
topology: v5e:2x2
jax: 0.10.0
libtpu: 0.0.40
codegen_flags: <defaults>
</compile_context>

<pallas_src>
import jax
import jax.numpy as jnp
from jax.experimental import pallas as pl
from jax.experimental.pallas import tpu as pltpu


def edge_score_kernel(src_ref, dst_ref, put_ref, pvt_ref, b_ref, o_ref):
    """One tile of edge scores in transposed (lane-dense) layout.

    src_ref, dst_ref : (1, TE)   int32 endpoint node ids for this edge tile
    put_ref, pvt_ref : (C, Np)   per-node projections W_u@h.T / W_v@h.T (resident)
    b_ref            : (C, 1)    bias
    o_ref            : (C, TE)   scores^T for this tile (C -> sublanes, TE lanes)
    """
    n_pad = put_ref.shape[1]
    te = src_ref.shape[1]

    # One-hot gather matrices built on the VPU: onehot[n, e] = (n == idx[e]).
    node_ids = jax.lax.broadcasted_iota(jnp.int32, (n_pad, te), 0)
    oh_src = (node_ids == src_ref[...]).astype(put_ref.dtype)      # (Np, TE)
    oh_dst = (node_ids == dst_ref[...]).astype(pvt_ref.dtype)      # (Np, TE)

    # Gather-as-matmul on the MXU: (C, Np) @ (Np, TE) -> (C, TE).
    acc = jnp.dot(put_ref[...], oh_src, preferred_element_type=jnp.float32)
    acc = acc + jnp.dot(pvt_ref[...], oh_dst, preferred_element_type=jnp.float32)
    o_ref[...] = (acc + b_ref[...]).astype(o_ref.dtype)


def mlp_predictor_forward(h, src, dst, W, b, *, tile_e=1024):
    """Pallas implementation of MLPPredictor.forward.

    h:   [N, F]  float32 node features
    src: [E]     int32 edge source node ids
    dst: [E]     int32 edge destination node ids
    W:   [C, 2F] linear weight (torch nn.Linear layout)
    b:   [C]     linear bias
    returns: [E, C] edge scores
    """
    N, F = h.shape
    C = W.shape[0]
    E = src.shape[0]
    highest = jax.lax.Precision.HIGHEST

    # --- per-node projections (tiny: [C, N]) ---------------------------------
    PuT = jnp.dot(W[:, :F], h.T, precision=highest).astype(jnp.float32)   # (C, N)
    PvT = jnp.dot(W[:, F:], h.T, precision=highest).astype(jnp.float32)   # (C, N)
    b2 = b.reshape(C, 1).astype(jnp.float32)

    # Pad node dim to a sublane multiple so the (Np, TE) one-hot tiles cleanly.
    # TODO(synk): for very large graphs (N*C*4 B > VMEM) this resident-projection
    # + one-hot-matmul gather should be replaced by a DMA row-gather over HBM.
    N_pad = max(8, ((N + 7) // 8) * 8)
    if N_pad != N:
        PuT = jnp.pad(PuT, ((0, 0), (0, N_pad - N)))
        PvT = jnp.pad(PvT, ((0, 0), (0, N_pad - N)))

    # --- edge tiling: large, lane-dense tiles; pad only the int32 indices ----
    tile_e = max(128, (int(tile_e) // 128) * 128)
    tile_e = min(tile_e, ((E + 127) // 128) * 128)
    E_pad = ((E + tile_e - 1) // tile_e) * tile_e
    src_p = jnp.pad(src.astype(jnp.int32), (0, E_pad - E)).reshape(1, E_pad)
    dst_p = jnp.pad(dst.astype(jnp.int32), (0, E_pad - E)).reshape(1, E_pad)

    out_t = pl.pallas_call(
        edge_score_kernel,
        out_shape=jax.ShapeDtypeStruct((C, E_pad), jnp.float32),
        grid_spec=pltpu.PrefetchScalarGridSpec(
            num_scalar_prefetch=0,
            grid=(E_pad // tile_e,),
            in_specs=[
                pl.BlockSpec((1, tile_e), lambda i: (0, i)),    # src ids tile
                pl.BlockSpec((1, tile_e), lambda i: (0, i)),    # dst ids tile
                pl.BlockSpec((C, N_pad), lambda i: (0, 0)),     # PuT (resident)
                pl.BlockSpec((C, N_pad), lambda i: (0, 0)),     # PvT (resident)
                pl.BlockSpec((C, 1),     lambda i: (0, 0)),     # bias (resident)
            ],
            out_specs=pl.BlockSpec((C, tile_e), lambda i: (0, i)),
        ),
        compiler_params=pltpu.CompilerParams(
            dimension_semantics=("parallel",)),
    )(src_p, dst_p, PuT, PvT, b2)

    # back to the torch layout [E, C]
    return out_t[:, :E].T.astype(h.dtype)


if __name__ == "__main__":
    # small deterministic problem consistent with the module
    N = 16            # number of graph nodes
    F_in = 32         # in_features
    C = 8             # out_classes
    E = 64            # number of edges

    key = jax.random.PRNGKey(0)
    k_h, k_src, k_dst, k_w, k_b = jax.random.split(key, 5)

    h = jax.random.normal(k_h, (N, F_in), dtype=jnp.float32)
    src = jax.random.randint(k_src, (E,), 0, N, dtype=jnp.int32)
    dst = jax.random.randint(k_dst, (E,), 0, N, dtype=jnp.int32)

    # nn.Linear(in_features*2, out_classes): W [C, 2F], b [C]
    bound = 1.0 / jnp.sqrt(2.0 * F_in)
    W = jax.random.uniform(k_w, (C, 2 * F_in), jnp.float32, -bound, bound)
    b = jax.random.uniform(k_b, (C,), jnp.float32, -bound, bound)

    scores = mlp_predictor_forward(h, src, dst, W, b)
    scores = jax.block_until_ready(scores)

    # reference check (plain JAX, full f32 precision)
    x_ref = jnp.concatenate([h[src], h[dst]], axis=1)
    ref = jnp.dot(x_ref, W.T, precision=jax.lax.Precision.HIGHEST) + b
    assert scores.shape == (E, C)
    assert jnp.allclose(scores, ref, atol=1e-5, rtol=1e-5)

    print("KERNEL_OK")
</pallas_src>

<mosaic_0001>
module attributes {stable_mosaic.version = 11 : i64} {
  func.func @edge_score_kernel(%arg0: i32, %arg1: memref<1x128xi32, #tpu.memory_space<vmem>>, %arg2: memref<1x128xi32, #tpu.memory_space<vmem>>, %arg3: memref<8x16xf32, #tpu.memory_space<vmem>>, %arg4: memref<8x16xf32, #tpu.memory_space<vmem>>, %arg5: memref<8x1xf32, #tpu.memory_space<vmem>>, %arg6: memref<8x128xf32, #tpu.memory_space<vmem>>) attributes {dimension_semantics = [#tpu.dimension_semantics<parallel>], iteration_bounds = array<i64: 1>, scalar_prefetch = 0 : i64, scratch_operands = 0 : i64, tpu.core_type = #tpu.core_type<tc>, window_params = [{transform_indices = @transform_0, window_bounds = array<i64: 1, 128>}, {transform_indices = @transform_1, window_bounds = array<i64: 1, 128>}, {pipeline_mode = #tpu.pipeline_mode<synchronous>, transform_indices = @transform_2, window_bounds = array<i64: 8, 16>}, {pipeline_mode = #tpu.pipeline_mode<synchronous>, transform_indices = @transform_3, window_bounds = array<i64: 8, 16>}, {pipeline_mode = #tpu.pipeline_mode<synchronous>, transform_indices = @transform_4, window_bounds = array<i64: 8, 1>}, {transform_indices = @transform_5, window_bounds = array<i64: 8, 128>}]} {
    %0 = tpu.iota {dimensions = array<i32: 0>} : vector<16x128xi32>
    %c0 = arith.constant 0 : index
    %c0_0 = arith.constant 0 : index
    %1 = vector.load %arg1[%c0, %c0_0] : memref<1x128xi32, #tpu.memory_space<vmem>>, vector<1x128xi32>
    %2 = vector.broadcast %1 : vector<1x128xi32> to vector<16x128xi32>
    %3 = arith.cmpi eq, %0, %2 : vector<16x128xi32>
    %4 = arith.extui %3 : vector<16x128xi1> to vector<16x128xi32>
    %5 = arith.sitofp %4 : vector<16x128xi32> to vector<16x128xf32>
    %c0_1 = arith.constant 0 : index
    %c0_2 = arith.constant 0 : index
    %6 = vector.load %arg2[%c0_1, %c0_2] : memref<1x128xi32, #tpu.memory_space<vmem>>, vector<1x128xi32>
    %7 = vector.broadcast %6 : vector<1x128xi32> to vector<16x128xi32>
    %8 = arith.cmpi eq, %0, %7 : vector<16x128xi32>
    %9 = arith.extui %8 : vector<16x128xi1> to vector<16x128xi32>
    %10 = arith.sitofp %9 : vector<16x128xi32> to vector<16x128xf32>
    %c0_3 = arith.constant 0 : index
    %c0_4 = arith.constant 0 : index
    %11 = vector.load %arg3[%c0_3, %c0_4] : memref<8x16xf32, #tpu.memory_space<vmem>>, vector<8x16xf32>
    %cst = arith.constant dense<0.000000e+00> : vector<8x128xf32>
    %12 = tpu.matmul %11, %5, %cst {dimension_numbers = #tpu.dot_dimension_numbers<[1], [0], [0], [1], [0, 0, 1, 1], [], []>} : vector<8x16xf32>, vector<16x128xf32>, vector<8x128xf32> -> vector<8x128xf32>
    %c0_5 = arith.constant 0 : index
    %c0_6 = arith.constant 0 : index
    %13 = vector.load %arg4[%c0_5, %c0_6] : memref<8x16xf32, #tpu.memory_space<vmem>>, vector<8x16xf32>
    %cst_7 = arith.constant dense<0.000000e+00> : vector<8x128xf32>
    %14 = tpu.matmul %13, %10, %cst_7 {dimension_numbers = #tpu.dot_dimension_numbers<[1], [0], [0], [1], [0, 0, 1, 1], [], []>} : vector<8x16xf32>, vector<16x128xf32>, vector<8x128xf32> -> vector<8x128xf32>
    %15 = arith.addf %12, %14 : vector<8x128xf32>
    %c0_8 = arith.constant 0 : index
    %c0_9 = arith.constant 0 : index
    %16 = vector.load %arg5[%c0_8, %c0_9] : memref<8x1xf32, #tpu.memory_space<vmem>>, vector<8x1xf32>
    %17 = vector.broadcast %16 : vector<8x1xf32> to vector<8x128xf32>
    %18 = arith.addf %15, %17 : vector<8x128xf32>
    %c0_10 = arith.constant 0 : index
    %c0_11 = arith.constant 0 : index
    %19 = vector.load %arg6[%c0_10, %c0_11] : memref<8x128xf32, #tpu.memory_space<vmem>>, vector<8x128xf32>
    tpu.vector_store %arg6[%c0_10, %c0_11], %18 {strides = array<i32>} : memref<8x128xf32, #tpu.memory_space<vmem>>, vector<8x128xf32>,
    return
  }
  func.func @transform_0(%arg0: i32) -> (i32, i32) {
    %c0_i32 = arith.constant 0 : i32
    %c0_i32_0 = arith.constant 0 : i32
    return %c0_i32, %arg0 : i32, i32
  }
  func.func @transform_1(%arg0: i32) -> (i32, i32) {
    %c0_i32 = arith.constant 0 : i32
    %c0_i32_0 = arith.constant 0 : i32
    return %c0_i32, %arg0 : i32, i32
  }
  func.func @transform_2(%arg0: i32) -> (i32, i32) {
    %c0_i32 = arith.constant 0 : i32
    %c0_i32_0 = arith.constant 0 : i32
    %c0_i32_1 = arith.constant 0 : i32
    return %c0_i32, %c0_i32_0 : i32, i32
  }
  func.func @transform_3(%arg0: i32) -> (i32, i32) {
    %c0_i32 = arith.constant 0 : i32
    %c0_i32_0 = arith.constant 0 : i32
    %c0_i32_1 = arith.constant 0 : i32
    return %c0_i32, %c0_i32_0 : i32, i32
  }
  func.func @transform_4(%arg0: i32) -> (i32, i32) {
    %c0_i32 = arith.constant 0 : i32
    %c0_i32_0 = arith.constant 0 : i32
    %c0_i32_1 = arith.constant 0 : i32
    return %c0_i32, %c0_i32_0 : i32, i32
  }
  func.func @transform_5(%arg0: i32) -> (i32, i32) {
    %c0_i32 = arith.constant 0 : i32
    %c0_i32_0 = arith.constant 0 : i32
    return %c0_i32, %arg0 : i32, i32
  }
}

</mosaic_0001>

<llo_original>
// kernel: tpu_custom_call.1
$region0: #{tpu_custom_call.1}
  #allocation0 [shape = 'u32[]', space=smem, size = 0x4, offset = 0x4, fixed_abs, tag = 'smem constant byte address 0x4 - core index']
  #allocation1 [shape = 'u32[72,128]{1,0:T(1,128)}', space=vmem, size = 0x9000, scoped, tag = 'internal scratch']
  %s0 = inlined_call_operand.vmem [shape: s32[1,128], index: 0, kind: input, shape index: {}]
  %s1 = inlined_call_operand.hbm [shape: s32[1,128], index: 1, kind: input, shape index: {}]
  %s2 = inlined_call_operand.vmem [shape: f32[8,16], index: 2, kind: input, shape index: {}]
  %s3 = inlined_call_operand.hbm [shape: f32[8,16], index: 3, kind: input, shape index: {}]
  %s4 = inlined_call_operand.vmem [shape: f32[8,1], index: 4, kind: input, shape index: {}]
  %s5 = inlined_call_operand.hbm [shape: f32[8,128], index: 5, kind: output, shape index: {}]
  %s6 = sld [smem:[#allocation0]]
  $region38: #{tpu_custom_call.1} parent=0
    _
  %s8 = ssub.s32 1, %s6
  %s9 = scalar_select 0, %s8, %s6
  $region1: #{tpu_custom_call.1} parent=0
    #allocation2 [shape = 'u8[512]{0}', space=vmem, size = 0x400, scoped, tag = 'input window, operand 1, single buffered']
    #allocation3 [shape = 's32[1]{0}', space=sflag, size = 0x4, scoped, tag = 'scoped memory for tpu_custom_call.1']
    #allocation4 [shape = 's32[1]{0}', space=sflag, size = 0x4, scoped, tag = 'scoped memory for tpu_custom_call.1']
    #allocation5 [shape = 'u8[4096]{0}', space=vmem, size = 0x1000, scoped, tag = 'input window, operand 3, single buffered']
    #allocation6 [shape = 's32[1]{0}', space=sflag, size = 0x4, scoped, tag = 'scoped memory for tpu_custom_call.1']
    #allocation7 [shape = 'u8[4096]{0}', space=vmem, size = 0x1000, scoped, tag = 'output window, operand 0, single buffered']
    %10 = vsyncpa [#allocation3], 0
    %11 = vsyncpa [#allocation6], 0
    %12 = vsyncpa [#allocation4], 0
    // Predicated region
    $region2: #{tpu_custom_call.1} parent=1 // pred_check
      _
    $region3: #{tpu_custom_call.1} parent=1 // pred_check_branch
      %14 = sbr.rel (0) target = $region5
    $region4: #{tpu_custom_call.1} parent=1 // pred_region
      _
    $region5: #{tpu_custom_call.1} parent=1 // pred_fallthru
      _
    // Predicated region
    $region6: #{tpu_custom_call.1} parent=1 // pred_check
      _
    $region7: #{tpu_custom_call.1} parent=1 // pred_check_branch
      %16 = sbr.rel (0) target = $region9
    $region8: #{tpu_custom_call.1} parent=1 // pred_region
      %18 = vsyncadd [#allocation3], 0
      %s20 = sshll.u32 %s1, 4
      %s21 = int_to_ptr.hbm [resolvable:$true] %s20
      %s22 = sshll.u32 [#allocation2], 4
      %s23 = int_to_ptr.vmem [resolvable:$true] %s22
      %25 = dma.hbm_to_vmem [thread:$0]  %s21, 16, %s23, [#allocation3]
    $region9: #{tpu_custom_call.1} parent=1 // pred_fallthru
      _
    // Predicated region
    $region10: #{tpu_custom_call.1} parent=1 // pred_check
      _
    $region11: #{tpu_custom_call.1} parent=1 // pred_check_branch
      %27 = sbr.rel (0) target = $region13
    $region12: #{tpu_custom_call.1} parent=1 // pred_region
      _
    $region13: #{tpu_custom_call.1} parent=1 // pred_fallthru
      _
    // Predicated region
    $region14: #{tpu_custom_call.1} parent=1 // pred_check
      _
    $region15: #{tpu_custom_call.1} parent=1 // pred_check_branch
      %29 = sbr.rel (0) target = $region17
    $region16: #{tpu_custom_call.1} parent=1 // pred_region
      %31 = vsyncadd [#allocation6], 0
      %s33 = sshll.u32 %s3, 4
      %s34 = int_to_ptr.hbm [resolvable:$true] %s33
      %s35 = sshll.u32 [#allocation5], 4
      %s36 = int_to_ptr.vmem [resolvable:$true] %s35
      %38 = dma.hbm_to_vmem [thread:$0]  %s34, 128, %s36, [#allocation6]
    $region17: #{tpu_custom_call.1} parent=1 // pred_fallthru
      _
    // Predicated region
    $region18: #{tpu_custom_call.1} parent=1 // pred_check
      _
    $region19: #{tpu_custom_call.1} parent=1 // pred_check_branch
      %40 = sbr.rel (0) target = $region21
    $region20: #{tpu_custom_call.1} parent=1 // pred_region
      _
    $region21: #{tpu_custom_call.1} parent=1 // pred_fallthru
      _
    // Predicated region
    $region22: #{tpu_custom_call.1} parent=1 // pred_check
      _
    $region23: #{tpu_custom_call.1} parent=1 // pred_check_branch
      %42 = sbr.rel (0) target = $region25
    $region24: #{tpu_custom_call.1} parent=1 // pred_region
      %44 = dma.done [#allocation3], 16
    $region25: #{tpu_custom_call.1} parent=1 // pred_fallthru
      _
    // Predicated region
    $region26: #{tpu_custom_call.1} parent=1 // pred_check
      _
    $region27: #{tpu_custom_call.1} parent=1 // pred_check_branch
      %46 = sbr.rel (0) target = $region29
    $region28: #{tpu_custom_call.1} parent=1 // pred_region
      %48 = dma.done [#allocation6], 128
    $region29: #{tpu_custom_call.1} parent=1 // pred_fallthru
      _
    %v49 = vlaneseq
    %v50 = vshrl.u32 %v49, 7
    %v51 = vadd.s32 %v50, 8
    %v52 = vld [vmem:[%s0] sm:$0x1]
    %v53 = vperm.slane %v52, 0
    %vm54 = vcmp.eq.s32.totalorder %v50, %v53
    %vm55 = vcmp.eq.s32.totalorder %v51, %v53
    %v56 = vsel %vm54, 1, 0
    %v57 = vsel %vm55, 1, 0
    %v58 = vcvt.s32.f32 %v56
    %v59 = vcvt.s32.f32 %v57
    %v60 = vld [vmem:[#allocation2] sm:$0x1]
    %v61 = vperm.slane %v60, 0
    %vm62 = vcmp.eq.s32.totalorder %v50, %v61
    %vm63 = vcmp.eq.s32.totalorder %v51, %v61
    %v64 = vsel %vm62, 1, 0
    %v65 = vsel %vm63, 1, 0
    %v66 = vcvt.s32.f32 %v64
    %v67 = vcvt.s32.f32 %v65
    %v68 = vld [vmem:[%s2] sm:$0xff]
    %v69 = vld [vmem:[#allocation5] sm:$0xff]
    %vm70 = vcmask 130048
    %v72 = vsel %vm70, %v69, 0
    %74 = vmatpush.msra.mxu0 0.0
    %75 = vmatpush.msra.mxu0 0.0
    %76 = vmatpush.msra.mxu0 0.0
    %77 = vmatpush.msra.mxu0 0.0
    %78 = vmatpush.msra.mxu0 0.0
    %79 = vmatpush.msra.mxu0 0.0
    %80 = vmatpush.msra.mxu0 0.0
    %81 = vmatpush.msra.mxu0 0.0
    %82 = vmatpush.msra.mxu0 0.0
    %83 = vmatpush.msra.mxu0 0.0
    %84 = vmatpush.msra.mxu0 0.0
    %85 = vmatpush.msra.mxu0 0.0
    %86 = vmatpush.msra.mxu0 0.0
    %87 = vmatpush.msra.mxu0 0.0
    %88 = vmatpush.msra.mxu0 %v67
    %89 = vmatpush.msra.mxu0 %v66
    %90 = vmatmul.f32.gmra.mxu0 %v72
    %v91 = vpop.f32.mrf.mxu0
    %v92 = vadd.f32 0.0, %v91
    %93 = vdwg.mxu0
    %v95 = vsel %vm70, %v68, 0
    %97 = vmatpush.msra.mxu0 0.0
    %98 = vmatpush.msra.mxu0 0.0
    %99 = vmatpush.msra.mxu0 0.0
    %100 = vmatpush.msra.mxu0 0.0
    %101 = vmatpush.msra.mxu0 0.0
    %102 = vmatpush.msra.mxu0 0.0
    %103 = vmatpush.msra.mxu0 0.0
    %104 = vmatpush.msra.mxu0 0.0
    %105 = vmatpush.msra.mxu0 0.0
    %106 = vmatpush.msra.mxu0 0.0
    %107 = vmatpush.msra.mxu0 0.0
    %108 = vmatpush.msra.mxu0 0.0
    %109 = vmatpush.msra.mxu0 0.0
    %110 = vmatpush.msra.mxu0 0.0
    %111 = vmatpush.msra.mxu0 %v59
    %112 = vmatpush.msra.mxu0 %v58
    %113 = vmatmul.f32.gmra.mxu0 %v95
    %v114 = vpop.f32.mrf.mxu0
    %v115 = vadd.f32 %v92, %v114
    %116 = vdwg.mxu0
    %v117 = vld [vmem:[%s4] sm:$0xff]
    %119 = vset.pattern.permute.xlu0 0
    %120 = vperm.xlu0 %119, %v117
    %v121 = vpop.permute.xlu0 %120
    %v123 = vadd.f32 %v115, %v121
    %124 = vst [vmem:[#allocation7] sm:$0xff] %v123
    // Predicated region
    $region30: #{tpu_custom_call.1} parent=1 // pred_check
      _
    $region31: #{tpu_custom_call.1} parent=1 // pred_check_branch
      %126 = sbr.rel (0) target = $region33
    $region32: #{tpu_custom_call.1} parent=1 // pred_region
      %128 = vsyncadd [#allocation4], 0
      %s130 = sshll.u32 [#allocation7], 4
      %s131 = int_to_ptr.vmem [resolvable:$true] %s130
      %s132 = sshll.u32 %s5, 4
      %s133 = int_to_ptr.hbm [resolvable:$true] %s132
      %135 = dma.vmem_to_hbm [thread:$0]  %s131, 128, %s133, [#allocation4]
    $region33: #{tpu_custom_call.1} parent=1 // pred_fallthru
      _
    // Predicated region
    $region34: #{tpu_custom_call.1} parent=1 // pred_check
      _
    $region35: #{tpu_custom_call.1} parent=1 // pred_check_branch
      %137 = sbr.rel (0) target = $region37
    $region36: #{tpu_custom_call.1} parent=1 // pred_region
      %139 = dma.done [#allocation4], 128
    $region37: #{tpu_custom_call.1} parent=1 // pred_fallthru
      _
    %140 = vsyncpa [#allocation3], 1
    %141 = vsyncpa [#allocation6], 1
    %142 = vsyncpa [#allocation4], 1

</llo_original>
